<compile_context>
chip_gen: v7x
topology: tpu7x:2x2x1
jax: 0.10.0
libtpu: 0.0.40
codegen_flags: <defaults>
</compile_context>

<pallas_src>
import functools
import math

import jax
import jax.numpy as jnp
from jax.experimental import pallas as pl
from jax.experimental.pallas import tpu as pltpu


def _round_up(x, m):
    return ((x + m - 1) // m) * m


def _select_tiles(n_pad):
    """Row tile (>=2 tiles, 256-aligned when possible) and K tile."""
    tm = 128
    for cand in (512, 256, 128):
        if n_pad % cand == 0 and n_pad // cand >= 2:
            tm = cand
            break
    # Small graphs: do the whole contraction in a single K step (fast path,
    # no accumulator scratch needed).
    if n_pad <= 2048:
        return tm, n_pad
    # Otherwise: largest K tile dividing n_pad whose double-buffered f32 adj
    # tile stays under ~8 MiB.
    tk = 256
    for cand in (4096, 2048, 1024, 512, 256):
        if n_pad % cand == 0 and 2 * tm * cand * 4 <= (8 << 20):
            tk = cand
            break
    return tm, tk


# ---------------------------------------------------------------------------
# Kernel 1: support = x @ W   (bf16 MXU inputs, f32 accumulate, bf16 output)
# ---------------------------------------------------------------------------
def support_kernel(x_ref, w_ref, s_ref):
    x = x_ref[...].astype(jnp.bfloat16)
    w = w_ref[...].astype(jnp.bfloat16)
    s = jnp.dot(x, w, preferred_element_type=jnp.float32)
    s_ref[...] = s.astype(s_ref.dtype)


def _compute_support(x_p, w_pad, *, tm):
    n_pad, f_in = x_p.shape
    f_pad = w_pad.shape[1]
    cost = pl.CostEstimate(
        flops=2 * n_pad * f_in * f_pad,
        transcendentals=0,
        bytes_accessed=(
            n_pad * f_in * x_p.dtype.itemsize
            + f_in * f_pad * w_pad.dtype.itemsize
            + n_pad * f_pad * 2
        ),
    )
    return pl.pallas_call(
        support_kernel,
        out_shape=jax.ShapeDtypeStruct((n_pad, f_pad), jnp.bfloat16),
        grid_spec=pltpu.PrefetchScalarGridSpec(
            num_scalar_prefetch=0,
            grid=(n_pad // tm,),
            in_specs=[
                pl.BlockSpec((tm, f_in), lambda i: (i, 0)),     # row tile of x
                pl.BlockSpec((f_in, f_pad), lambda i: (0, 0)),  # full weight
            ],
            out_specs=pl.BlockSpec((tm, f_pad), lambda i: (i, 0)),
        ),
        compiler_params=pltpu.CompilerParams(
            dimension_semantics=("parallel",),
        ),
        cost_estimate=cost,
    )(x_p, w_pad)


# ---------------------------------------------------------------------------
# Kernel 2: out = adj @ support + bias
# ---------------------------------------------------------------------------
def aggregate_kernel_single(adj_ref, s_ref, b_ref, o_ref):
    """K grid of 1: no accumulator scratch, no predication."""
    a = adj_ref[...].astype(jnp.bfloat16)   # cast tile in-kernel (no XLA convert)
    acc = jnp.dot(a, s_ref[...], preferred_element_type=jnp.float32)
    o_ref[...] = (acc + b_ref[...]).astype(o_ref.dtype)


def aggregate_kernel_ktiled(adj_ref, s_ref, b_ref, o_ref, acc_ref, *,
                            tk, support_resident):
    k = pl.program_id(1)

    @pl.when(k == 0)
    def _():
        acc_ref[...] = jnp.zeros_like(acc_ref)

    a = adj_ref[...].astype(jnp.bfloat16)
    if support_resident:
        # Full support stays resident in VMEM; slice the K-slab in-kernel.
        start = pl.multiple_of(k * tk, tk)
        s = s_ref[pl.ds(start, tk), :]
    else:
        s = s_ref[...]
    acc_ref[...] += jnp.dot(a, s, preferred_element_type=jnp.float32)

    @pl.when(k == pl.num_programs(1) - 1)
    def _():
        o_ref[...] = (acc_ref[...] + b_ref[...]).astype(o_ref.dtype)


def _aggregate(adj_p, support, bias2d, out_dtype, *, tm, tk, support_resident):
    n_pad, f_pad = support.shape
    n_rows = n_pad // tm
    n_k = n_pad // tk
    adj_isz = jnp.dtype(adj_p.dtype).itemsize
    out_isz = jnp.dtype(out_dtype).itemsize

    # HBM traffic actually incurred (support re-streamed per row tile unless
    # resident / single-K).
    sup_reads = 1 if (support_resident or n_k == 1) else n_rows
    cost = pl.CostEstimate(
        flops=2 * n_pad * n_pad * f_pad,
        transcendentals=0,
        bytes_accessed=(
            n_pad * n_pad * adj_isz
            + sup_reads * n_pad * f_pad * 2
            + n_pad * f_pad * out_isz
            + f_pad * 4
        ),
    )

    # Right-sized VMEM limit: double-buffered tiles + resident support +
    # accumulator, ~2x slack, capped v7x-safe (64 MiB/TC).
    adj_buf = 2 * tm * (n_pad if n_k == 1 else tk) * adj_isz
    sup_buf = (2 * n_pad * f_pad * 2) if (support_resident or n_k == 1) \
        else (2 * tk * f_pad * 2)
    out_buf = 2 * tm * f_pad * out_isz
    acc_buf = 0 if n_k == 1 else tm * f_pad * 4
    footprint = adj_buf + sup_buf + out_buf + acc_buf + 2 * f_pad * 4
    vmem_limit = int(min(max(2 * footprint, 32 << 20), 56 << 20))

    if n_k == 1:
        kernel = aggregate_kernel_single
        grid = (n_rows,)
        in_specs = [
            pl.BlockSpec((tm, n_pad), lambda i: (i, 0)),     # adj row stripe
            pl.BlockSpec((n_pad, f_pad), lambda i: (0, 0)),  # support resident
            pl.BlockSpec((1, f_pad), lambda i: (0, 0)),      # bias row
        ]
        out_spec = pl.BlockSpec((tm, f_pad), lambda i: (i, 0))
        scratch = []
        semantics = ("parallel",)
    else:
        kernel = functools.partial(
            aggregate_kernel_ktiled, tk=tk, support_resident=support_resident)
        grid = (n_rows, n_k)
        if support_resident:
            s_spec = pl.BlockSpec((n_pad, f_pad), lambda i, k: (0, 0))  # DMA once
        else:
            s_spec = pl.BlockSpec((tk, f_pad), lambda i, k: (k, 0))     # stream
        in_specs = [
            pl.BlockSpec((tm, tk), lambda i, k: (i, k)),     # adj tile
            s_spec,
            pl.BlockSpec((1, f_pad), lambda i, k: (0, 0)),   # bias row
        ]
        out_spec = pl.BlockSpec((tm, f_pad), lambda i, k: (i, 0))
        scratch = [pltpu.VMEM((tm, f_pad), jnp.float32)]
        semantics = ("parallel", "arbitrary")

    return pl.pallas_call(
        kernel,
        out_shape=jax.ShapeDtypeStruct((n_pad, f_pad), out_dtype),
        grid_spec=pltpu.PrefetchScalarGridSpec(
            num_scalar_prefetch=0,
            grid=grid,
            in_specs=in_specs,
            out_specs=out_spec,
            scratch_shapes=scratch,
        ),
        compiler_params=pltpu.CompilerParams(
            dimension_semantics=semantics,
            vmem_limit_bytes=vmem_limit,
        ),
        cost_estimate=cost,
    )(adj_p, support, bias2d)


def graph_convolution(inp, adj, weight, bias=None):
    """GCN layer forward: adj @ (inp @ weight) + bias."""
    n, f_in = inp.shape
    f_out = weight.shape[1]
    assert adj.shape == (n, n)

    # Lane-pad F_out so every output store is lane-dense (unmasked vst).
    f_pad = _round_up(f_out, 128)
    f_extra = f_pad - f_out
    w_pad = jnp.pad(weight, ((0, 0), (0, f_extra))) if f_extra else weight
    if bias is None:
        bias2d = jnp.zeros((1, f_pad), jnp.float32)
    else:
        bias2d = bias.reshape(1, f_out).astype(jnp.float32)
        if f_extra:
            bias2d = jnp.pad(bias2d, ((0, 0), (0, f_extra)))

    # Row/col-pad N so good tiles divide it, awkward N never collapses the
    # grid, and the "parallel" row axis has >= 2 tiles (both v7x TCs busy).
    n_pad = max(_round_up(n, 128), 256)
    n_extra = n_pad - n
    x_p = jnp.pad(inp, ((0, n_extra), (0, 0))) if n_extra else inp
    adj_p = jnp.pad(adj, ((0, n_extra), (0, n_extra))) if n_extra else adj

    tm, tk = _select_tiles(n_pad)
    support_resident = (n_pad * f_pad * 2) <= (8 << 20)

    # Kernel 1 (runs once): support = x @ W, emitted in bf16.
    support = _compute_support(x_p, w_pad, tm=tm)

    # Kernel 2: out = adj @ support + bias (adj streamed in native dtype,
    # cast to bf16 in-kernel; f32 MXU accumulation).
    out_pad = _aggregate(adj_p, support, bias2d, inp.dtype,
                         tm=tm, tk=tk, support_resident=support_resident)

    out = out_pad[:n] if n_extra else out_pad
    return out[:, :f_out] if f_extra else out


if __name__ == "__main__":
    # Small, TPU-friendly shapes.
    N = 128          # number of graph nodes
    F_IN = 32        # in_features
    F_OUT = 64       # out_features

    key = jax.random.PRNGKey(0)
    k_x, k_adj, k_w, k_b = jax.random.split(key, 4)

    # Deterministic parameter init, mirroring reset_parameters():
    #   stdv = 1 / sqrt(out_features); uniform(-stdv, stdv)
    stdv = 1.0 / math.sqrt(F_OUT)
    weight = jax.random.uniform(k_w, (F_IN, F_OUT), jnp.float32, -stdv, stdv)
    bias = jax.random.uniform(k_b, (F_OUT,), jnp.float32, -stdv, stdv)

    # Node features.
    x = jax.random.normal(k_x, (N, F_IN), jnp.float32)

    # Synthetic "normalized adjacency": random nonneg matrix, row-normalized.
    a_raw = jax.random.uniform(k_adj, (N, N), jnp.float32, 0.0, 1.0)
    a_raw = a_raw + jnp.eye(N, dtype=jnp.float32)          # self-loops
    adj = a_raw / jnp.sum(a_raw, axis=1, keepdims=True)    # row-normalize

    out = graph_convolution(x, adj, weight, bias)
    out = jax.block_until_ready(out)

    # Reference check against plain f32 JAX (same semantics as torch.mm/spmm).
    # Tolerance loosened because support/adj go through bf16 (f32 accumulate).
    ref = adj @ (x @ weight) + bias
    assert out.shape == (N, F_OUT)
    assert jnp.allclose(out, ref, atol=2e-2, rtol=2e-2), "mismatch vs reference"

    print("KERNEL_OK")
</pallas_src>

<mosaic_0001>
module attributes {stable_mosaic.version = 11 : i64} {
  func.func @support_kernel(%arg0: i32, %arg1: memref<128x32xf32, #tpu.memory_space<vmem>>, %arg2: memref<32x128xf32, #tpu.memory_space<vmem>>, %arg3: memref<128x128xbf16, #tpu.memory_space<vmem>>) attributes {dimension_semantics = [#tpu.dimension_semantics<parallel>], iteration_bounds = array<i64: 2>, scalar_prefetch = 0 : i64, scratch_operands = 0 : i64, tpu.core_type = #tpu.core_type<tc>, window_params = [{transform_indices = @transform_0, window_bounds = array<i64: 128, 32>}, {pipeline_mode = #tpu.pipeline_mode<synchronous>, transform_indices = @transform_1, window_bounds = array<i64: 32, 128>}, {transform_indices = @transform_2, window_bounds = array<i64: 128, 128>}]} {
    %c0 = arith.constant 0 : index
    %c0_0 = arith.constant 0 : index
    %0 = vector.load %arg1[%c0, %c0_0] : memref<128x32xf32, #tpu.memory_space<vmem>>, vector<128x32xf32>
    %1 = arith.truncf %0 : vector<128x32xf32> to vector<128x32xbf16>
    %c0_1 = arith.constant 0 : index
    %c0_2 = arith.constant 0 : index
    %2 = vector.load %arg2[%c0_1, %c0_2] : memref<32x128xf32, #tpu.memory_space<vmem>>, vector<32x128xf32>
    %3 = arith.truncf %2 : vector<32x128xf32> to vector<32x128xbf16>
    %cst = arith.constant dense<0.000000e+00> : vector<128x128xf32>
    %4 = tpu.matmul %1, %3, %cst {dimension_numbers = #tpu.dot_dimension_numbers<[1], [0], [0], [1], [0, 0, 1, 1], [], []>} : vector<128x32xbf16>, vector<32x128xbf16>, vector<128x128xf32> -> vector<128x128xf32>
    %5 = arith.truncf %4 : vector<128x128xf32> to vector<128x128xbf16>
    %c0_3 = arith.constant 0 : index
    %c0_4 = arith.constant 0 : index
    %6 = vector.load %arg3[%c0_3, %c0_4] : memref<128x128xbf16, #tpu.memory_space<vmem>>, vector<128x128xbf16>
    tpu.vector_store %arg3[%c0_3, %c0_4], %5 {strides = array<i32>} : memref<128x128xbf16, #tpu.memory_space<vmem>>, vector<128x128xbf16>,
    return
  }
  func.func @transform_0(%arg0: i32) -> (i32, i32) {
    %c0_i32 = arith.constant 0 : i32
    %c0_i32_0 = arith.constant 0 : i32
    return %arg0, %c0_i32 : i32, i32
  }
  func.func @transform_1(%arg0: i32) -> (i32, i32) {
    %c0_i32 = arith.constant 0 : i32
    %c0_i32_0 = arith.constant 0 : i32
    %c0_i32_1 = arith.constant 0 : i32
    return %c0_i32, %c0_i32_0 : i32, i32
  }
  func.func @transform_2(%arg0: i32) -> (i32, i32) {
    %c0_i32 = arith.constant 0 : i32
    %c0_i32_0 = arith.constant 0 : i32
    return %arg0, %c0_i32 : i32, i32
  }
}

</mosaic_0001>

<llo_original>
// kernel: tpu_custom_call.1
$region0: #{tpu_custom_call.1}
  #allocation0 [shape = 'u32[]', space=smem, size = 0x4, offset = 0x4, fixed_abs, tag = 'smem constant byte address 0x4 - core index']
  #allocation1 [shape = 'u32[144,128]{1,0:T(1,128)}', space=vmem, size = 0x12000, scoped, tag = 'internal scratch']
  %s0 = inlined_call_operand.vmem [shape: f32[256,32], index: 0, kind: input, shape index: {}]
  %s1 = inlined_call_operand.vmem [shape: f32[32,128], index: 1, kind: input, shape index: {}]
  %s2 = inlined_call_operand.hbm [shape: bf16[256,128], index: 2, kind: output, shape index: {}]
  %s3 = sld [smem:[#allocation0]]
  $region41: #{tpu_custom_call.1} parent=0
    _
  %s5 = ssub.s32 1, %s3
  %s6 = scalar_select 0, %s5, %s3
  $region1: #{tpu_custom_call.1} parent=0
    #allocation2 [shape = 'u8[65536]{0}', space=vmem, size = 0x10000, scoped, tag = 'output window, operand 0']
    #allocation3 [shape = 's32[2]{0}', space=sflag, size = 0x8, scoped, tag = 'scoped memory for tpu_custom_call.1']
    %7 = vsyncpa [#allocation3], 0
    %s8 = scalar_lea.sflag [#allocation3], 1
    %9 = vsyncpa %s8, 0
    loop: start=0, step=1, limit=4
    $region2: #{tpu_custom_call.1} parent=1 // loop_pre_header
      _
    $region3: #{tpu_custom_call.1} parent=1 // loop_header
      %s11 = sphi 0, %s15
      %p12 = scmp.ge.s32.totalorder %s11, 4
      %s21 = sphi 0, %s23
      %s24 = sphi 0, %s21
      %s25 = sphi 0, %s24
      %s41 = sphi 0, %s25
      %s45 = sphi 0, %s45
      %s47 = sphi 0, %s45
      %s48 = sphi 0, %s47
      %s62 = sphi 0, %s48
      %s68 = sphi 0, %s70
      %s71 = sphi 0, %s68
      %s72 = sphi 0, %s71
      %s88 = sphi 0, %s72
    $region4: #{tpu_custom_call.1} parent=1 // loop_header_branch
      %14 = sbr.rel (%p12) target = $region8
    $region5: #{tpu_custom_call.1} parent=1 // loop_body
      %s16 = ssub.s32 %s11, 1
      %s17 = ssub.s32 %s11, 2
      %s18 = sadd.s32 %s11, 1
      %s19 = ssub.s32 %s11, %s18
      %p20 = scmp.eq.s32.totalorder %s19, 0
      %s22 = sadd.s32 %s21, 1
      %s23 = scalar_select %p20, %s21, %s22
      %p26 = pneg %p20
      %p27 = scmp.eq.s32.totalorder %s11, 1
      %p28 = por %p26, %p27
      %p29 = scmp.ne.s32.totalorder %s21, %s24
      %p30 = scmp.eq.s32.totalorder %s11, 0
      %p31 = por %p29, %p30
      %p32 = scmp.ne.s32.totalorder %s21, %s24
      %p33 = scmp.eq.s32.totalorder %s16, 1
      %p34 = por %p32, %p33
      %p35 = scmp.ne.s32.totalorder %s24, %s25
      %p36 = scmp.eq.s32.totalorder %s16, 0
      %p37 = por %p35, %p36
      %p38 = scmp.ne.s32.totalorder %s24, %s25
      %p39 = scmp.eq.s32.totalorder %s17, 1
      %p40 = por %p38, %p39
      %p42 = scmp.ne.s32.totalorder %s25, %s41
      %p43 = scmp.eq.s32.totalorder %s17, 0
      %p44 = por %p42, %p43
      %s46 = sadd.s32 %s45, 1
      %p49 = scmp.eq.s32.totalorder %s11, 1
      %p50 = scmp.ne.s32.totalorder %s45, %s47
      %p51 = scmp.eq.s32.totalorder %s11, 0
      %p52 = por %p50, %p51
      %p53 = scmp.ne.s32.totalorder %s45, %s47
      %p54 = scmp.eq.s32.totalorder %s16, 1
      %p55 = por %p53, %p54
      %p56 = scmp.ne.s32.totalorder %s47, %s48
      %p57 = scmp.eq.s32.totalorder %s16, 0
      %p58 = por %p56, %p57
      %p59 = scmp.ne.s32.totalorder %s47, %s48
      %p60 = scmp.eq.s32.totalorder %s17, 1
      %p61 = por %p59, %p60
      %p63 = scmp.ne.s32.totalorder %s48, %s62
      %p64 = scmp.eq.s32.totalorder %s17, 0
      %p65 = por %p63, %p64
      %s66 = ssub.s32 %s11, %s18
      %p67 = scmp.eq.s32.totalorder %s66, 0
      %s69 = sadd.s32 %s68, 1
      %s70 = scalar_select %p67, %s68, %s69
      %p73 = pneg %p67
      %p74 = scmp.eq.s32.totalorder %s11, 1
      %p75 = por %p73, %p74
      %p76 = scmp.ne.s32.totalorder %s68, %s71
      %p77 = scmp.eq.s32.totalorder %s11, 0
      %p78 = por %p76, %p77
      %p79 = scmp.ne.s32.totalorder %s68, %s71
      %p80 = scmp.eq.s32.totalorder %s16, 1
      %p81 = por %p79, %p80
      %p82 = scmp.ne.s32.totalorder %s71, %s72
      %p83 = scmp.eq.s32.totalorder %s16, 0
      %p84 = por %p82, %p83
      %p85 = scmp.ne.s32.totalorder %s71, %s72
      %p86 = scmp.eq.s32.totalorder %s17, 1
      %p87 = por %p85, %p86
      %p89 = scmp.ne.s32.totalorder %s72, %s88
      %p90 = scmp.eq.s32.totalorder %s17, 0
      %p91 = por %p89, %p90
      %p92 = scmp.le.s32.totalorder 1, %s11
      %p93 = scmp.lt.s32.totalorder %s11, 3
      %p94 = pnand %p92, %p93
      %p95 = pneg %p94
      // Predicated region
      $region9: #{tpu_custom_call.1} parent=5 // pred_check
        _
      $region10: #{tpu_custom_call.1} parent=5 // pred_check_branch
        %97 = sbr.rel (%p94) target = $region12
      $region11: #{tpu_custom_call.1} parent=5 // pred_region
        %s98 = ssub.s32 %s11, 1
        // Predicated region
        $region13: #{tpu_custom_call.1} parent=11 // pred_check
          %p99 = pneg %p58
        $region14: #{tpu_custom_call.1} parent=11 // pred_check_branch
          %101 = sbr.rel (%p99) target = $region16
        $region15: #{tpu_custom_call.1} parent=11 // pred_region
          _
        $region16: #{tpu_custom_call.1} parent=11 // pred_fallthru
          _
      $region12: #{tpu_custom_call.1} parent=5 // pred_fallthru
        _
      %p102 = scmp.lt.s32.totalorder %s11, 2
      // Predicated region
      $region17: #{tpu_custom_call.1} parent=5 // pred_check
        %p103 = pneg %p102
      $region18: #{tpu_custom_call.1} parent=5 // pred_check_branch
        %105 = sbr.rel (%p103) target = $region20
      $region19: #{tpu_custom_call.1} parent=5 // pred_region
        // Predicated region
        $region21: #{tpu_custom_call.1} parent=19 // pred_check
          %p106 = pneg %p31
        $region22: #{tpu_custom_call.1} parent=19 // pred_check_branch
          %108 = sbr.rel (%p106) target = $region24
        $region23: #{tpu_custom_call.1} parent=19 // pred_region
          %s109 = smul.u32 16, %s11
          %p110 = scmp.lt.s32.totalorder %s109, 31
          %s111 = scalar_select %p110, %s109, 31
          %s112 = smul.addr %s111, 8
          %s113 = scalar_lea.vmem %s0, %s112
          %s114 = smul.u32 16, %s11
        $region24: #{tpu_custom_call.1} parent=19 // pred_fallthru
          _
      $region20: #{tpu_custom_call.1} parent=5 // pred_fallthru
        _
      %p115 = scmp.le.s32.totalorder 1, %s11
      %p116 = scmp.lt.s32.totalorder %s11, 3
      %p117 = pnand %p115, %p116
      %p118 = pneg %p117
      // Predicated region
      $region25: #{tpu_custom_call.1} parent=5 // pred_check
        _
      $region26: #{tpu_custom_call.1} parent=5 // pred_check_branch
        %120 = sbr.rel (%p117) target = $region28
      $region27: #{tpu_custom_call.1} parent=5 // pred_region
        %s121 = ssub.s32 %s11, 1
        %s122 = smul.u32 16, %s16
        %p123 = scmp.lt.s32.totalorder %s122, 31
        %s124 = scalar_select %p123, %s122, 31
        %s125 = smul.addr %s124, 8
        %s126 = scalar_lea.vmem %s0, %s125
        %p127 = pneg %p37
        %p128 = pneg %p34
        %p129 = pneg %p58
        %p130 = pneg %p55
        %p131 = pneg %p84
        %p132 = pneg %p81
        %s133 = sand.u32 %s71, 1
        %s134 = scalar_lea.sflag [#allocation3], %s133
        %s135 = sand.u32 %s71, 1
        %s136 = smul.addr %s135, 64
        %s137 = scalar_lea.vmem [#allocation2], %s136
        %s138 = smul.u32 16, %s16
        %p139 = scmp.lt.s32.totalorder %s138, 31
        %s140 = scalar_select %p139, %s138, 31
        %s141 = smul.addr %s140, 8
        %s142 = scalar_lea.vmem %s0, %s141
        %s143 = smul.u32 16, %s16
        %s144 = smul.u32 16, %s16
        %v146 = vld [vmem:[%s142] sm:$0xff]
        %v147 = vld [vmem:[%s142 + $0x8] sm:$0xff]
        %v148 = vld [vmem:[%s142 + $0x10] sm:$0xff]
        %v149 = vld [vmem:[%s142 + $0x18] sm:$0xff]
        %v150 = vld [vmem:[%s142 + $0x20] sm:$0xff]
        %v151 = vld [vmem:[%s142 + $0x28] sm:$0xff]
        %v152 = vld [vmem:[%s142 + $0x30] sm:$0xff]
        %v153 = vld [vmem:[%s142 + $0x38] sm:$0xff]
        %v154 = vld [vmem:[%s142 + $0x40] sm:$0xff]
        %v155 = vld [vmem:[%s142 + $0x48] sm:$0xff]
        %v156 = vld [vmem:[%s142 + $0x50] sm:$0xff]
        %v157 = vld [vmem:[%s142 + $0x58] sm:$0xff]
        %v158 = vld [vmem:[%s142 + $0x60] sm:$0xff]
        %v159 = vld [vmem:[%s142 + $0x68] sm:$0xff]
        %v160 = vld [vmem:[%s142 + $0x70] sm:$0xff]
        %v161 = vld [vmem:[%s142 + $0x78] sm:$0xff]
        %v162 = vpack.c.bf16 %v147, %v146
        %v163 = vpack.c.bf16 %v149, %v148
        %v164 = vpack.c.bf16 %v151, %v150
        %v165 = vpack.c.bf16 %v153, %v152
        %v166 = vpack.c.bf16 %v155, %v154
        %v167 = vpack.c.bf16 %v157, %v156
        %v168 = vpack.c.bf16 %v159, %v158
        %v169 = vpack.c.bf16 %v161, %v160
        %v170 = vld [vmem:[%s1] sm:$0xff]
        %v171 = vld [vmem:[%s1 + $0x8] sm:$0xff]
        %v172 = vld [vmem:[%s1 + $0x10] sm:$0xff]
        %v173 = vld [vmem:[%s1 + $0x18] sm:$0xff]
        %v174 = vpack.c.bf16 %v171, %v170
        %v175 = vpack.c.bf16 %v173, %v172
        %vm176 = vcmask 261120
        %v178 = vsel %vm176, %v162, 0
        %v181 = vsel %vm176, %v163, 0
        %v184 = vsel %vm176, %v164, 0
        %v187 = vsel %vm176, %v165, 0
        %v190 = vsel %vm176, %v166, 0
        %v193 = vsel %vm176, %v167, 0
        %v196 = vsel %vm176, %v168, 0
        %v199 = vsel %vm176, %v169, 0
        %201 = vmatprep.subr.bf16.mxu0 0
        %202 = vmatpush1.bf16.msra.mxu0 %v174
        %203 = vmatprep.subr.bf16.mxu0 0
        %204 = vmatpush1.bf16.msra.mxu0 %v175
        %205 = vmatprep.subr.bf16.mxu0 0
        %206 = vmatpush1.bf16.msra.mxu0 0
        %207 = vmatprep.subr.bf16.mxu0 0
        %208 = vmatpush1.bf16.msra.mxu0 0
        %209 = vmatprep.subr.bf16.mxu0 0
        %210 = vmatpush1.bf16.msra.mxu0 0
        %211 = vmatprep.subr.bf16.mxu0 0
        %212 = vmatpush1.bf16.msra.mxu0 0
        %213 = vmatprep.subr.bf16.mxu0 0
        %214 = vmatpush1.bf16.msra.mxu0 0
        %215 = vmatprep.subr.bf16.mxu0 0
        %216 = vmatpush1.bf16.msra.mxu0 0
        %217 = vmatprep.subr.bf16.mxu0 0
        %218 = vmatpush1.bf16.msra.mxu0 0
        %219 = vmatprep.subr.bf16.mxu0 0
        %220 = vmatpush1.bf16.msra.mxu0 0
        %221 = vmatprep.subr.bf16.mxu0 0
        %222 = vmatpush1.bf16.msra.mxu0 0
        %223 = vmatprep.subr.bf16.mxu0 0
        %224 = vmatpush1.bf16.msra.mxu0 0
        %225 = vmatprep.subr.bf16.mxu0 0
        %226 = vmatpush1.bf16.msra.mxu0 0
        %227 = vmatprep.subr.bf16.mxu0 0
        %228 = vmatpush1.bf16.msra.mxu0 0
        %229 = vmatprep.subr.bf16.mxu0 0
        %230 = vmatpush1.bf16.msra.mxu0 0
        %231 = vmatprep.subr.bf16.mxu0 0
        %232 = vmatpush1.bf16.msra.mxu0 0
        %233 = vmatprep.mubr.bf16.mxu0 0
        %234 = vmatmul.mubr.bf16.gmra.mrb[0].mxu0 %v178
        %v235 = vpop.f32.mrb[0].mxu0
        %v236 = vadd.f32 0.0, %v235
        %v237 = vpop.f32.mrb[0].mxu0
        %v238 = vpop.f32.mrb[0].mxu0
        %v239 = vadd.f32 0.0, %v238
        %v240 = vpop.f32.mrb[0].mxu0
        %241 = vmatprep.mubr.bf16.mxu0 0
        %242 = vmatmul.mubr.bf16.gmra.mrb[0].mxu0 %v181
        %v243 = vpop.f32.mrb[0].mxu0
        %v244 = vadd.f32 0.0, %v243
        %v245 = vpop.f32.mrb[0].mxu0
        %v246 = vpop.f32.mrb[0].mxu0
        %v247 = vadd.f32 0.0, %v246
        %v248 = vpop.f32.mrb[0].mxu0
        %249 = vmatprep.mubr.bf16.mxu0 0
        %250 = vmatmul.mubr.bf16.gmra.mrb[0].mxu0 %v184
        %v251 = vpop.f32.mrb[0].mxu0
        %v252 = vadd.f32 0.0, %v251
        %v253 = vpop.f32.mrb[0].mxu0
        %v254 = vpop.f32.mrb[0].mxu0
        %v255 = vadd.f32 0.0, %v254
        %v256 = vpop.f32.mrb[0].mxu0
        %257 = vmatprep.mubr.bf16.mxu0 0
        %258 = vmatmul.mubr.bf16.gmra.mrb[0].mxu0 %v187
        %v259 = vpop.f32.mrb[0].mxu0
        %v260 = vadd.f32 0.0, %v259
        %v261 = vpop.f32.mrb[0].mxu0
        %v262 = vpop.f32.mrb[0].mxu0
        %v263 = vadd.f32 0.0, %v262
        %v264 = vpop.f32.mrb[0].mxu0
        %265 = vmatprep.mubr.bf16.mxu0 0
        %266 = vmatmul.mubr.bf16.gmra.mrb[0].mxu0 %v190
        %v267 = vpop.f32.mrb[0].mxu0
        %v268 = vadd.f32 0.0, %v267
        %v269 = vpop.f32.mrb[0].mxu0
        %v270 = vpop.f32.mrb[0].mxu0
        %v271 = vadd.f32 0.0, %v270
        %v272 = vpop.f32.mrb[0].mxu0
        %273 = vmatprep.mubr.bf16.mxu0 0
        %274 = vmatmul.mubr.bf16.gmra.mrb[0].mxu0 %v193
        %v275 = vpop.f32.mrb[0].mxu0
        %v276 = vadd.f32 0.0, %v275
        %v277 = vpop.f32.mrb[0].mxu0
        %v278 = vpop.f32.mrb[0].mxu0
        %v279 = vadd.f32 0.0, %v278
        %v280 = vpop.f32.mrb[0].mxu0
        %281 = vmatprep.mubr.bf16.mxu0 0
        %282 = vmatmul.mubr.bf16.gmra.mrb[0].mxu0 %v196
        %v283 = vpop.f32.mrb[0].mxu0
        %v284 = vadd.f32 0.0, %v283
        %v285 = vpop.f32.mrb[0].mxu0
        %v286 = vpop.f32.mrb[0].mxu0
        %v287 = vadd.f32 0.0, %v286
        %v288 = vpop.f32.mrb[0].mxu0
        %289 = vmatprep.mubr.bf16.mxu0 0
        %290 = vmatmul.mubr.bf16.gmra.mrb[0].mxu0 %v199
        %v291 = vpop.f32.mrb[0].mxu0
        %v292 = vadd.f32 0.0, %v291
        %v293 = vpop.f32.mrb[0].mxu0
        %v294 = vpop.f32.mrb[0].mxu0
        %v295 = vadd.f32 0.0, %v294
        %v296 = vpop.f32.mrb[0].mxu0
        %297 = vdwg.mxu0
        %v298 = vpack.c.bf16 %v239, %v236
        %v299 = vpack.c.bf16 %v247, %v244
        %v300 = vpack.c.bf16 %v255, %v252
        %v301 = vpack.c.bf16 %v263, %v260
        %v302 = vpack.c.bf16 %v271, %v268
        %v303 = vpack.c.bf16 %v279, %v276
        %v304 = vpack.c.bf16 %v287, %v284
        %v305 = vpack.c.bf16 %v295, %v292
        %v314 = vunpack.c.l.b16 %v298
        %v315 = vunpack.c.h.b16 %v298
        %v316 = vunpack.c.l.b16 %v299
        %v317 = vunpack.c.h.b16 %v299
        %v318 = vunpack.c.l.b16 %v300
        %v319 = vunpack.c.h.b16 %v300
        %v320 = vunpack.c.l.b16 %v301
        %v321 = vunpack.c.h.b16 %v301
        %v322 = vunpack.c.l.b16 %v302
        %v323 = vunpack.c.h.b16 %v302
        %v324 = vunpack.c.l.b16 %v303
        %v325 = vunpack.c.h.b16 %v303
        %v326 = vunpack.c.l.b16 %v304
        %v327 = vunpack.c.h.b16 %v304
        %v328 = vunpack.c.l.b16 %v305
        %v329 = vunpack.c.h.b16 %v305
        %v330 = vpack.c.b16 %v314, %v314
        %v331 = vpack.c.b16 %v315, %v315
        %v332 = vpack.c.b16 %v316, %v316
        %v333 = vpack.c.b16 %v317, %v317
        %v334 = vpack.c.b16 %v318, %v318
        %v335 = vpack.c.b16 %v319, %v319
        %v336 = vpack.c.b16 %v320, %v320
        %v337 = vpack.c.b16 %v321, %v321
        %v338 = vpack.c.b16 %v322, %v322
        %v339 = vpack.c.b16 %v323, %v323
        %v340 = vpack.c.b16 %v324, %v324
        %v341 = vpack.c.b16 %v325, %v325
        %v342 = vpack.c.b16 %v326, %v326
        %v343 = vpack.c.b16 %v327, %v327
        %v344 = vpack.c.b16 %v328, %v328
        %v345 = vpack.c.b16 %v329, %v329
        %362 = vst [vmem:[%s137] sm:$0xf] %v330
        %363 = vst [vmem:[%s137 + $0x4] sm:$0xf] %v331
        %364 = vst [vmem:[%s137 + $0x8] sm:$0xf] %v332
        %365 = vst [vmem:[%s137 + $0xc] sm:$0xf] %v333
        %366 = vst [vmem:[%s137 + $0x10] sm:$0xf] %v334
        %367 = vst [vmem:[%s137 + $0x14] sm:$0xf] %v335
        %368 = vst [vmem:[%s137 + $0x18] sm:$0xf] %v336
        %369 = vst [vmem:[%s137 + $0x1c] sm:$0xf] %v337
        %370 = vst [vmem:[%s137 + $0x20] sm:$0xf] %v338
        %371 = vst [vmem:[%s137 + $0x24] sm:$0xf] %v339
        %372 = vst [vmem:[%s137 + $0x28] sm:$0xf] %v340
        %373 = vst [vmem:[%s137 + $0x2c] sm:$0xf] %v341
        %374 = vst [vmem:[%s137 + $0x30] sm:$0xf] %v342
        %375 = vst [vmem:[%s137 + $0x34] sm:$0xf] %v343
        %376 = vst [vmem:[%s137 + $0x38] sm:$0xf] %v344
        %377 = vst [vmem:[%s137 + $0x3c] sm:$0xf] %v345
        %s378 = sand.u32 %s71, 1
        %s379 = scalar_lea.sflag [#allocation3], %s378
        %s380 = sand.u32 %s71, 1
        %s381 = smul.addr %s380, 64
        %s382 = scalar_lea.vmem [#allocation2], %s381
        // Predicated region
        $region29: #{tpu_custom_call.1} parent=27 // pred_check
          %p383 = pneg %p81
        $region30: #{tpu_custom_call.1} parent=27 // pred_check_branch
          %385 = sbr.rel (%p383) target = $region32
        $region31: #{tpu_custom_call.1} parent=27 // pred_region
          %s386 = smul.u32 16, %s16
          %s388 = ssub.s32 1024, 1024
          %389 = vsyncadd %s379, %s388
          %s390 = smul.addr %s386, 64
          %s391 = scalar_lea.hbm %s2, %s390
          %s392 = sshll.u32 %s382, 4
          %s393 = int_to_ptr.vmem [resolvable:$true] %s392
          %398 = dma.vmem_to_hbm [thread:$0]  %s393, 1024, %s391, %s379, 64, 64, 4
        $region32: #{tpu_custom_call.1} parent=27 // pred_fallthru
          _
      $region28: #{tpu_custom_call.1} parent=5 // pred_fallthru
        _
      %p399 = scmp.le.s32.totalorder 2, %s11
      // Predicated region
      $region33: #{tpu_custom_call.1} parent=5 // pred_check
        %p400 = pneg %p399
      $region34: #{tpu_custom_call.1} parent=5 // pred_check_branch
        %402 = sbr.rel (%p400) target = $region36
      $region35: #{tpu_custom_call.1} parent=5 // pred_region
        %s403 = ssub.s32 %s11, 2
        // Predicated region
        $region37: #{tpu_custom_call.1} parent=35 // pred_check
          %p404 = pneg %p87
        $region38: #{tpu_custom_call.1} parent=35 // pred_check_branch
          %406 = sbr.rel (%p404) target = $region40
        $region39: #{tpu_custom_call.1} parent=35 // pred_region
          %s407 = sand.u32 %s72, 1
          %s408 = scalar_lea.sflag [#allocation3], %s407
          %s409 = sand.u32 %s72, 1
          %s410 = smul.addr %s409, 64
          %s411 = scalar_lea.vmem [#allocation2], %s410
          %412 = dma.done %s408, 1024
        $region40: #{tpu_custom_call.1} parent=35 // pred_fallthru
          _
      $region36: #{tpu_custom_call.1} parent=5 // pred_fallthru
        _
    $region6: #{tpu_custom_call.1} parent=1 // loop_footer
      %s15 = sadd.s32 1, %s11
    $region7: #{tpu_custom_call.1} parent=1 // loop_footer_branch
      %10 = sbr.rel target = $region3
    $region8: #{tpu_custom_call.1} parent=1 // loop_exit
      _
    %413 = vsyncpa [#allocation3], 1
    %s414 = scalar_lea.sflag [#allocation3], 1
    %415 = vsyncpa %s414, 1

</llo_original>
